<compile_context>
chip_gen: v5e
topology: v5e:2x2
jax: 0.10.0
libtpu: 0.0.40
codegen_flags: <defaults>
</compile_context>

<pallas_src>
import jax
import jax.numpy as jnp
from jax.experimental import pallas as pl
from jax.experimental.pallas import tpu as pltpu


def _feature_wise_attention_kernel(x_ref, w1_ref, b1_ref, w2t_ref, b2_ref, o_ref):
    # x_ref  : (S, tB, H)   float32   (VMEM, double-buffered by Pallas)
    # w1_ref : (H, H//2)    float32   (VMEM)
    # b1_ref : (1, H//2)    float32   (VMEM)
    # w2t_ref: (1, H//2)    float32   (VMEM)  -- w2 transposed, lane-dense
    # b2_ref : (1, 1)       float32   (SMEM)  -- scalar
    # o_ref  : (tB, H)      float32
    x = x_ref[...]                                               # (S, tB, H) f32

    # ---- attention MLP: Linear -> ReLU -> (N=1 Linear as lane-reduce) ----
    # bf16 inputs on the MXU, f32 accumulation.
    h = jnp.einsum(
        "sbh,hk->sbk",
        x.astype(jnp.bfloat16),
        w1_ref[...].astype(jnp.bfloat16),
        preferred_element_type=jnp.float32,
    )                                                            # (S, tB, H//2)
    h = jnp.maximum(h + b1_ref[...][None, :, :], 0.0)            # ReLU

    b2 = b2_ref[0, 0]                                            # SMEM scalar
    # Second linear (output width 1) as a VPU reduce; keep trailing size-1 dim.
    logits = jnp.sum(h * w2t_ref[...][None, :, :],
                     axis=-1, keepdims=True) + b2                # (S, tB, 1)

    # ---- softmax over axis 0, normalization deferred past the reduction ----
    m = jnp.max(logits, axis=0, keepdims=True)                   # (1, tB, 1)
    p = jnp.exp(logits - m)                                      # (S, tB, 1)
    denom = jnp.sum(p, axis=0)                                   # (tB, 1)

    # ---- weighted sum over axis 0 with unnormalized weights, then scale ----
    acc = jnp.sum(x * p, axis=0)                                 # (tB, H) f32
    o_ref[...] = acc * pl.reciprocal(denom, approx=True)         # (tB, H)


def _choose_tile_b(S, B, H, budget_bytes=20 * 1024 * 1024):
    """Largest batch tile fitting the VMEM budget; tB == B or a multiple of 8
    that divides B (keeps the (8,128) block constraint and full coverage)."""
    half = H // 2
    # per-batch-row bytes: 2x double-buffered f32 x block + bf16 cast of x
    # + f32 h intermediate (+ small logits/p/out terms).
    per_b = S * (H * (4 * 2 + 2) + half * 4 + 8) + H * 8
    tb = max(1, budget_bytes // max(per_b, 1))
    if tb >= B:
        return B
    tb = (tb // 8) * 8
    while tb >= 8:
        if B % tb == 0:
            return tb
        tb -= 8
    return B  # fallback: single block over B


def feature_wise_attention(x, w1, b1, w2, b2):
    """x: (S, B, H) f32, w1: (H, H//2), b1: (1, H//2), w2: (H//2, 1),
    b2: (1, 1)  ->  (B, H) f32."""
    S, B, H = x.shape
    half = w1.shape[1]
    w2t = jnp.reshape(w2, (1, half))     # lane-dense layout for the kernel
    tb = _choose_tile_b(S, B, H)
    grid = (B // tb,)

    return pl.pallas_call(
        _feature_wise_attention_kernel,
        out_shape=jax.ShapeDtypeStruct((B, H), jnp.float32),
        grid=grid,
        in_specs=[
            pl.BlockSpec((S, tb, H), lambda i: (0, i, 0)),
            pl.BlockSpec((H, half), lambda i: (0, 0)),
            pl.BlockSpec((1, half), lambda i: (0, 0)),
            pl.BlockSpec((1, half), lambda i: (0, 0)),
            pl.BlockSpec(memory_space=pltpu.MemorySpace.SMEM),   # b2 scalar
        ],
        out_specs=pl.BlockSpec((tb, H), lambda i: (i, 0)),
        compiler_params=pltpu.CompilerParams(
            dimension_semantics=("parallel",),
            vmem_limit_bytes=32 * 1024 * 1024,
        ),
    )(x, w1, b1, w2t, b2)


def reference(x, w1, b1, w2, b2):
    """Pure-JAX reference mirroring the PyTorch forward exactly (f32)."""
    h = jnp.maximum(jnp.einsum("sbh,hk->sbk", x, w1) + b1[0], 0.0)
    logits = jnp.einsum("sbk,ko->sbo", h, w2) + b2[0]            # (S, B, 1)
    attn = jax.nn.softmax(logits, axis=0)
    return jnp.sum(x * attn, axis=0)


if __name__ == "__main__":
    S, B, H = 8, 2, 32
    half = H // 2

    key = jax.random.PRNGKey(0)
    kx, kw1, kb1, kw2, kb2 = jax.random.split(key, 5)

    x = jax.random.normal(kx, (S, B, H), dtype=jnp.float32)

    # Deterministic parameter init (same shapes as nn.Linear weights/biases).
    lim1 = 1.0 / jnp.sqrt(H)
    w1 = jax.random.uniform(kw1, (H, half), minval=-lim1, maxval=lim1,
                            dtype=jnp.float32)
    b1 = jax.random.uniform(kb1, (1, half), minval=-lim1, maxval=lim1,
                            dtype=jnp.float32)
    lim2 = 1.0 / jnp.sqrt(half)
    w2 = jax.random.uniform(kw2, (half, 1), minval=-lim2, maxval=lim2,
                            dtype=jnp.float32)
    b2 = jax.random.uniform(kb2, (1, 1), minval=-lim2, maxval=lim2,
                            dtype=jnp.float32)

    out = feature_wise_attention(x, w1, b1, w2, b2)
    out = jax.block_until_ready(out)

    ref = reference(x, w1, b1, w2, b2)
    assert out.shape == (B, H)
    # Tolerance accounts for bf16 MXU inputs + approx reciprocal.
    assert jnp.all(jnp.isfinite(out)), "non-finite output"
    assert jnp.allclose(out, ref, atol=1e-2, rtol=1e-2), "mismatch vs reference"

    print("KERNEL_OK")
</pallas_src>

<mosaic_0001>
module attributes {stable_mosaic.version = 11 : i64} {
  func.func @_feature_wise_attention_kernel(%arg0: i32, %arg1: memref<8x2x32xf32, #tpu.memory_space<vmem>>, %arg2: memref<32x16xf32, #tpu.memory_space<vmem>>, %arg3: memref<1x16xf32, #tpu.memory_space<vmem>>, %arg4: memref<1x16xf32, #tpu.memory_space<vmem>>, %arg5: memref<1x1xf32, #tpu.memory_space<smem>>, %arg6: memref<2x32xf32, #tpu.memory_space<vmem>>) attributes {dimension_semantics = [#tpu.dimension_semantics<parallel>], iteration_bounds = array<i64: 1>, scalar_prefetch = 0 : i64, scratch_operands = 0 : i64, tpu.core_type = #tpu.core_type<tc>, window_params = [{transform_indices = @transform_0, window_bounds = array<i64: 8, 2, 32>}, {pipeline_mode = #tpu.pipeline_mode<synchronous>, transform_indices = @transform_1, window_bounds = array<i64: 32, 16>}, {pipeline_mode = #tpu.pipeline_mode<synchronous>, transform_indices = @transform_2, window_bounds = array<i64: 1, 16>}, {pipeline_mode = #tpu.pipeline_mode<synchronous>, transform_indices = @transform_3, window_bounds = array<i64: 1, 16>}, {transform_indices = @transform_4, window_bounds = array<i64: 1, 1>}, {transform_indices = @transform_5, window_bounds = array<i64: 2, 32>}]} {
    %c0 = arith.constant 0 : index
    %c0_0 = arith.constant 0 : index
    %c0_1 = arith.constant 0 : index
    %0 = vector.load %arg1[%c0, %c0_0, %c0_1] : memref<8x2x32xf32, #tpu.memory_space<vmem>>, vector<8x2x32xf32>
    %1 = arith.truncf %0 : vector<8x2x32xf32> to vector<8x2x32xbf16>
    %c0_2 = arith.constant 0 : index
    %c0_3 = arith.constant 0 : index
    %2 = vector.load %arg2[%c0_2, %c0_3] : memref<32x16xf32, #tpu.memory_space<vmem>>, vector<32x16xf32>
    %3 = arith.truncf %2 : vector<32x16xf32> to vector<32x16xbf16>
    "tpu.trace_start"() <{level = 10 : i32, message = "sbh,hk->sbk"}> : () -> ()
    %cst = arith.constant dense<0.000000e+00> : vector<8x2x16xf32>
    %4 = tpu.matmul %1, %3, %cst {dimension_numbers = #tpu.dot_dimension_numbers<[2], [0], [0, 1], [1], [0, 0, 0, 1, 1, 1], [], []>} : vector<8x2x32xbf16>, vector<32x16xbf16>, vector<8x2x16xf32> -> vector<8x2x16xf32>
    "tpu.trace_stop"() : () -> ()
    %c0_4 = arith.constant 0 : index
    %c0_5 = arith.constant 0 : index
    %5 = vector.load %arg3[%c0_4, %c0_5] : memref<1x16xf32, #tpu.memory_space<vmem>>, vector<1x16xf32>
    %6 = vector.shape_cast %5 : vector<1x16xf32> to vector<1x1x16xf32>
    %7 = vector.broadcast %6 : vector<1x1x16xf32> to vector<8x2x16xf32>
    %8 = arith.addf %4, %7 : vector<8x2x16xf32>
    %cst_6 = arith.constant 0.000000e+00 : f32
    %9 = vector.broadcast %cst_6 : f32 to vector<8x2x16xf32>
    %10 = arith.maximumf %8, %9 : vector<8x2x16xf32>
    %c0_7 = arith.constant 0 : index
    %c0_8 = arith.constant 0 : index
    %11 = memref.load %arg5[%c0_7, %c0_8] : memref<1x1xf32, #tpu.memory_space<smem>>
    %c0_9 = arith.constant 0 : index
    %c0_10 = arith.constant 0 : index
    %12 = vector.load %arg4[%c0_9, %c0_10] : memref<1x16xf32, #tpu.memory_space<vmem>>, vector<1x16xf32>
    %13 = vector.shape_cast %12 : vector<1x16xf32> to vector<1x1x16xf32>
    %14 = vector.broadcast %13 : vector<1x1x16xf32> to vector<8x2x16xf32>
    %15 = arith.mulf %10, %14 : vector<8x2x16xf32>
    %cst_11 = arith.constant dense<0.000000e+00> : vector<8x2xf32>
    %16 = vector.multi_reduction <add>, %15, %cst_11 [2] : vector<8x2x16xf32> to vector<8x2xf32>
    %17 = vector.shape_cast %16 : vector<8x2xf32> to vector<8x2x1xf32>
    %18 = vector.broadcast %11 : f32 to vector<8x2x1xf32>
    %19 = arith.addf %17, %18 : vector<8x2x1xf32>
    %cst_12 = arith.constant dense<0xFF800000> : vector<2x1xf32>
    %20 = vector.multi_reduction <maximumf>, %19, %cst_12 [0] : vector<8x2x1xf32> to vector<2x1xf32>
    %21 = vector.shape_cast %20 : vector<2x1xf32> to vector<1x2x1xf32>
    %22 = vector.broadcast %21 : vector<1x2x1xf32> to vector<8x2x1xf32>
    %23 = arith.subf %19, %22 : vector<8x2x1xf32>
    %24 = math.exp %23 : vector<8x2x1xf32>
    %cst_13 = arith.constant dense<0.000000e+00> : vector<2x1xf32>
    %25 = vector.multi_reduction <add>, %24, %cst_13 [0] : vector<8x2x1xf32> to vector<2x1xf32>
    %26 = vector.broadcast %24 : vector<8x2x1xf32> to vector<8x2x32xf32>
    %27 = arith.mulf %0, %26 : vector<8x2x32xf32>
    %cst_14 = arith.constant dense<0.000000e+00> : vector<2x32xf32>
    %28 = vector.multi_reduction <add>, %27, %cst_14 [0] : vector<8x2x32xf32> to vector<2x32xf32>
    %29 = tpu.reciprocal %25 {approx = true} : vector<2x1xf32> -> vector<2x1xf32>
    %30 = vector.broadcast %29 : vector<2x1xf32> to vector<2x32xf32>
    %31 = arith.mulf %28, %30 : vector<2x32xf32>
    %c0_15 = arith.constant 0 : index
    %c0_16 = arith.constant 0 : index
    %32 = vector.load %arg6[%c0_15, %c0_16] : memref<2x32xf32, #tpu.memory_space<vmem>>, vector<2x32xf32>
    tpu.vector_store %arg6[%c0_15, %c0_16], %31 {strides = array<i32>} : memref<2x32xf32, #tpu.memory_space<vmem>>, vector<2x32xf32>,
    return
  }
  func.func @transform_0(%arg0: i32) -> (i32, i32, i32) {
    %c0_i32 = arith.constant 0 : i32
    %c0_i32_0 = arith.constant 0 : i32
    %c0_i32_1 = arith.constant 0 : i32
    return %c0_i32, %arg0, %c0_i32_0 : i32, i32, i32
  }
  func.func @transform_1(%arg0: i32) -> (i32, i32) {
    %c0_i32 = arith.constant 0 : i32
    %c0_i32_0 = arith.constant 0 : i32
    %c0_i32_1 = arith.constant 0 : i32
    return %c0_i32, %c0_i32_0 : i32, i32
  }
  func.func @transform_2(%arg0: i32) -> (i32, i32) {
    %c0_i32 = arith.constant 0 : i32
    %c0_i32_0 = arith.constant 0 : i32
    %c0_i32_1 = arith.constant 0 : i32
    return %c0_i32, %c0_i32_0 : i32, i32
  }
  func.func @transform_3(%arg0: i32) -> (i32, i32) {
    %c0_i32 = arith.constant 0 : i32
    %c0_i32_0 = arith.constant 0 : i32
    %c0_i32_1 = arith.constant 0 : i32
    return %c0_i32, %c0_i32_0 : i32, i32
  }
  func.func @transform_4(%arg0: i32) -> (i32, i32) {
    %c0_i32 = arith.constant 0 : i32
    %c0_i32_0 = arith.constant 0 : i32
    %c0_i32_1 = arith.constant 0 : i32
    return %c0_i32, %c0_i32_0 : i32, i32
  }
  func.func @transform_5(%arg0: i32) -> (i32, i32) {
    %c0_i32 = arith.constant 0 : i32
    %c0_i32_0 = arith.constant 0 : i32
    return %arg0, %c0_i32 : i32, i32
  }
}

</mosaic_0001>

<llo_original>
// kernel: tpu_custom_call.1
$region0: #{tpu_custom_call.1}
  #allocation0 [shape = 'u32[]', space=smem, size = 0x4, offset = 0x4, fixed_abs, tag = 'smem constant byte address 0x4 - core index']
  #allocation1 [shape = 'u32[72,128]{1,0:T(1,128)}', space=vmem, size = 0x9000, scoped, tag = 'internal scratch']
  #allocation2 [shape = 'f32[1,1]{1,0:T(1,128)S(6)}', space=smem, size = 0x200, scoped, tag = 'scoped memory for tpu_custom_call.1']
  %s0 = inlined_call_operand.vmem [shape: f32[8,2,32], index: 0, kind: input, shape index: {}]
  %s1 = inlined_call_operand.vmem [shape: f32[32,16], index: 1, kind: input, shape index: {}]
  %s2 = inlined_call_operand.vmem [shape: f32[1,16], index: 2, kind: input, shape index: {}]
  %s3 = inlined_call_operand.vmem [shape: f32[1,16], index: 3, kind: input, shape index: {}]
  %s4 = inlined_call_operand.<no memory space> [shape: f32[1,1], index: 4, kind: input, shape index: {}]
  %s5 = inlined_call_operand.hbm [shape: f32[2,32], index: 5, kind: output, shape index: {}]
  %s6 = sld [smem:[#allocation0]]
  $region30: #{tpu_custom_call.1} parent=0
    _
  %s8 = ssub.s32 1, %s6
  %s9 = scalar_select 0, %s8, %s6
  %10 = sst [smem:[#allocation2]] %s4
  $region1: #{tpu_custom_call.1} parent=0
    #allocation3 [shape = 'u8[1024]{0}', space=vmem, size = 0x400, scoped, tag = 'output window, operand 0, single buffered']
    #allocation4 [shape = 's32[1]{0}', space=sflag, size = 0x4, scoped, tag = 'scoped memory for tpu_custom_call.1']
    %11 = vsyncpa [#allocation4], 0
    // Predicated region
    $region2: #{tpu_custom_call.1} parent=1 // pred_check
      _
    $region3: #{tpu_custom_call.1} parent=1 // pred_check_branch
      %13 = sbr.rel (0) target = $region5
    $region4: #{tpu_custom_call.1} parent=1 // pred_region
      _
    $region5: #{tpu_custom_call.1} parent=1 // pred_fallthru
      _
    // Predicated region
    $region6: #{tpu_custom_call.1} parent=1 // pred_check
      _
    $region7: #{tpu_custom_call.1} parent=1 // pred_check_branch
      %15 = sbr.rel (0) target = $region9
    $region8: #{tpu_custom_call.1} parent=1 // pred_region
      _
    $region9: #{tpu_custom_call.1} parent=1 // pred_fallthru
      _
    // Predicated region
    $region10: #{tpu_custom_call.1} parent=1 // pred_check
      _
    $region11: #{tpu_custom_call.1} parent=1 // pred_check_branch
      %17 = sbr.rel (0) target = $region13
    $region12: #{tpu_custom_call.1} parent=1 // pred_region
      _
    $region13: #{tpu_custom_call.1} parent=1 // pred_fallthru
      _
    // Predicated region
    $region14: #{tpu_custom_call.1} parent=1 // pred_check
      _
    $region15: #{tpu_custom_call.1} parent=1 // pred_check_branch
      %19 = sbr.rel (0) target = $region17
    $region16: #{tpu_custom_call.1} parent=1 // pred_region
      _
    $region17: #{tpu_custom_call.1} parent=1 // pred_fallthru
      _
    // Predicated region
    $region18: #{tpu_custom_call.1} parent=1 // pred_check
      _
    $region19: #{tpu_custom_call.1} parent=1 // pred_check_branch
      %21 = sbr.rel (0) target = $region21
    $region20: #{tpu_custom_call.1} parent=1 // pred_region
      _
    $region21: #{tpu_custom_call.1} parent=1 // pred_fallthru
      _
    %v23 = vld [vmem:[%s0] sm:$0x3]
    %v24 = vld [vmem:[%s0 + $0x2] sm:$0x3]
    %v25 = vld [vmem:[%s0 + $0x4] sm:$0x3]
    %v26 = vld [vmem:[%s0 + $0x6] sm:$0x3]
    %v27 = vld [vmem:[%s0 + $0x8] sm:$0x3]
    %v28 = vld [vmem:[%s0 + $0xa] sm:$0x3]
    %v29 = vld [vmem:[%s0 + $0xc] sm:$0x3]
    %v30 = vld [vmem:[%s0 + $0xe] sm:$0x3]
    %v31 = vpack.c.bf16 %v23, %v23
    %v32 = vpack.c.bf16 %v24, %v24
    %v33 = vpack.c.bf16 %v25, %v25
    %v34 = vpack.c.bf16 %v26, %v26
    %v35 = vpack.c.bf16 %v27, %v27
    %v36 = vpack.c.bf16 %v28, %v28
    %v37 = vpack.c.bf16 %v29, %v29
    %v38 = vpack.c.bf16 %v30, %v30
    %v39 = vld [vmem:[%s1] sm:$0xff]
    %v40 = vld [vmem:[%s1 + $0x8] sm:$0xff]
    %v41 = vld [vmem:[%s1 + $0x10] sm:$0xff]
    %v42 = vld [vmem:[%s1 + $0x18] sm:$0xff]
    %v43 = vpack.c.bf16 %v40, %v39
    %v44 = vpack.c.bf16 %v42, %v41
    %v45 = vld [vmem:[%s2] sm:$0x1]
    %v47 = vperm.slane %v45, 0
    %49 = vst [vmem:[#allocation1] ss:$9 sm:$0xff] %v31
    %s51 = scalar_lea.vmem [#allocation1], 1
    %52 = vst [vmem:[%s51] ss:$9 sm:$0xff] %v32
    %s54 = scalar_lea.vmem [#allocation1], 2
    %55 = vst [vmem:[%s54] ss:$9 sm:$0xff] %v33
    %s57 = scalar_lea.vmem [#allocation1], 3
    %58 = vst [vmem:[%s57] ss:$9 sm:$0xff] %v34
    %s60 = scalar_lea.vmem [#allocation1], 4
    %61 = vst [vmem:[%s60] ss:$9 sm:$0xff] %v35
    %s63 = scalar_lea.vmem [#allocation1], 5
    %64 = vst [vmem:[%s63] ss:$9 sm:$0xff] %v36
    %s66 = scalar_lea.vmem [#allocation1], 6
    %67 = vst [vmem:[%s66] ss:$9 sm:$0xff] %v37
    %s69 = scalar_lea.vmem [#allocation1], 7
    %70 = vst [vmem:[%s69] ss:$9 sm:$0xff] %v38
    %v71 = vld [vmem:[#allocation1] sm:$0xff]
    %72 = vst [vmem:[#allocation1] ss:$4 sm:$0xff] %v47
    %s73 = scalar_lea.vmem [#allocation1], 1
    %74 = vst [vmem:[%s73] ss:$4 sm:$0xff] %v47
    %s75 = scalar_lea.vmem [#allocation1], 2
    %76 = vst [vmem:[%s75] ss:$4 sm:$0xff] %v47
    %s77 = scalar_lea.vmem [#allocation1], 3
    %78 = vst [vmem:[%s77] ss:$4 sm:$0xff] %v47
    %s79 = scalar_lea.vmem [#allocation1], 32
    %80 = vst [vmem:[%s79] ss:$4 sm:$0xff] %v47
    %s81 = scalar_lea.vmem [#allocation1], 33
    %82 = vst [vmem:[%s81] ss:$4 sm:$0xff] %v47
    %s83 = scalar_lea.vmem [#allocation1], 34
    %84 = vst [vmem:[%s83] ss:$4 sm:$0xff] %v47
    %s85 = scalar_lea.vmem [#allocation1], 35
    %86 = vst [vmem:[%s85] ss:$4 sm:$0xff] %v47
    %v87 = vld.sshfl [vmem:[#allocation1] sm:$0xff pattern:$0x73625140]
    %v88 = vld.sshfl [vmem:[#allocation1 + $0x20] sm:$0xff pattern:$0x73625140]
    %vm91 = vcmask 261120
    %v92 = vsel %vm91, %v71, 0
    %94 = vmatpush.bf16.msra.mxu0 0
    %95 = vmatpush.bf16.msra.mxu0 0
    %96 = vmatpush.bf16.msra.mxu0 0
    %97 = vmatpush.bf16.msra.mxu0 0
    %98 = vmatpush.bf16.msra.mxu0 0
    %99 = vmatpush.bf16.msra.mxu0 0
    %100 = vmatpush.bf16.msra.mxu0 %v44
    %101 = vmatpush.bf16.msra.mxu0 %v43
    %102 = vmatmul.bf16.gmra.mxu0 %v92
    %v103 = vpop.f32.mrf.mxu0
    %v104 = vadd.f32 %v87, %v103
    %v105 = vpop.f32.mrf.mxu0
    %v106 = vadd.f32 %v88, %v105
    %107 = vdwg.mxu0
    %v110 = vrot.slane %v104, 2
    %v111 = vrot.slane %v104, 4
    %v112 = vrot.slane %v104, 6
    %v113 = vrot.slane %v106, 2
    %v114 = vrot.slane %v106, 4
    %v115 = vrot.slane %v106, 6
    %v122 = vmax.f32 %v104, 0.0
    %v123 = vmax.f32 %v110, 0.0
    %v124 = vmax.f32 %v111, 0.0
    %v125 = vmax.f32 %v112, 0.0
    %v126 = vmax.f32 %v106, 0.0
    %v127 = vmax.f32 %v113, 0.0
    %v128 = vmax.f32 %v114, 0.0
    %v129 = vmax.f32 %v115, 0.0
    %s130 = sld [smem:[#allocation2]]
    %v131 = vld [vmem:[%s3] sm:$0x1]
    %v133 = vperm.slane %v131, 0
    %v135 = vmul.f32 %v122, %v133
    %v136 = vmul.f32 %v123, %v133
    %v137 = vmul.f32 %v124, %v133
    %v138 = vmul.f32 %v125, %v133
    %v139 = vmul.f32 %v126, %v133
    %v140 = vmul.f32 %v127, %v133
    %v141 = vmul.f32 %v128, %v133
    %v142 = vmul.f32 %v129, %v133
    %vm143 = vcmask 123904
    %v144 = vsel %vm143, %v135, 0.0
    %145 = vadd.xlane.f32.xlu0 %v144
    %v146 = vpop.xlane.xlu0 %145
    %v147 = vsel %vm143, %v136, 0.0
    %148 = vadd.xlane.f32.xlu0 %v147
    %v149 = vpop.xlane.xlu0 %148
    %v150 = vsel %vm143, %v137, 0.0
    %151 = vadd.xlane.f32.xlu0 %v150
    %v152 = vpop.xlane.xlu0 %151
    %v153 = vsel %vm143, %v138, 0.0
    %154 = vadd.xlane.f32.xlu0 %v153
    %v155 = vpop.xlane.xlu0 %154
    %v156 = vsel %vm143, %v139, 0.0
    %157 = vadd.xlane.f32.xlu0 %v156
    %v158 = vpop.xlane.xlu0 %157
    %v159 = vsel %vm143, %v140, 0.0
    %160 = vadd.xlane.f32.xlu0 %v159
    %v161 = vpop.xlane.xlu0 %160
    %v162 = vsel %vm143, %v141, 0.0
    %163 = vadd.xlane.f32.xlu0 %v162
    %v164 = vpop.xlane.xlu0 %163
    %v165 = vsel %vm143, %v142, 0.0
    %166 = vadd.xlane.f32.xlu0 %v165
    %v167 = vpop.xlane.xlu0 %166
    %v168 = vstv %s130
    %v169 = vadd.f32 %v146, %v168
    %v170 = vadd.f32 %v149, %v168
    %v171 = vadd.f32 %v152, %v168
    %v172 = vadd.f32 %v155, %v168
    %v173 = vadd.f32 %v158, %v168
    %v174 = vadd.f32 %v161, %v168
    %v175 = vadd.f32 %v164, %v168
    %v176 = vadd.f32 %v167, %v168
    %vm177 = vcmask 1041408
    %v178 = vsel %vm177, %v169, -inf
    %v179 = vsel %vm177, %v170, -inf
    %v180 = vsel %vm177, %v171, -inf
    %v181 = vsel %vm177, %v172, -inf
    %v182 = vsel %vm177, %v173, -inf
    %v183 = vmax.f32 %v178, %v182
    %v184 = vsel %vm177, %v174, -inf
    %v185 = vmax.f32 %v179, %v184
    %v186 = vsel %vm177, %v175, -inf
    %v187 = vmax.f32 %v180, %v186
    %v188 = vsel %vm177, %v176, -inf
    %v189 = vmax.f32 %v181, %v188
    %v190 = vmax.f32 %v183, %v185
    %v191 = vmax.f32 %v187, %v189
    %v192 = vmax.f32 %v190, %v191
    %v193 = vsub.f32 %v169, %v192
    %v194 = vsub.f32 %v170, %v192
    %v195 = vsub.f32 %v171, %v192
    %v196 = vsub.f32 %v172, %v192
    %v197 = vsub.f32 %v173, %v192
    %v198 = vsub.f32 %v174, %v192
    %v199 = vsub.f32 %v175, %v192
    %v200 = vsub.f32 %v176, %v192
    %v201 = vmul.f32 %v193, 1.442695
    %v202 = vpow.pop %v201
    %v203 = vmul.f32 %v194, 1.442695
    %v204 = vpow.pop %v203
    %v205 = vmul.f32 %v195, 1.442695
    %v206 = vpow.pop %v205
    %v207 = vmul.f32 %v196, 1.442695
    %v208 = vpow.pop %v207
    %v209 = vmul.f32 %v197, 1.442695
    %v210 = vpow.pop %v209
    %v211 = vmul.f32 %v198, 1.442695
    %v212 = vpow.pop %v211
    %v213 = vmul.f32 %v199, 1.442695
    %v214 = vpow.pop %v213
    %v215 = vmul.f32 %v200, 1.442695
    %v216 = vpow.pop %v215
    %v217 = vsel %vm177, %v202, 0.0
    %v218 = vsel %vm177, %v204, 0.0
    %v219 = vadd.f32 %v217, %v218
    %v220 = vsel %vm177, %v206, 0.0
    %v221 = vadd.f32 %v219, %v220
    %v222 = vsel %vm177, %v208, 0.0
    %v223 = vadd.f32 %v221, %v222
    %v224 = vsel %vm177, %v210, 0.0
    %v225 = vadd.f32 %v223, %v224
    %v226 = vsel %vm177, %v212, 0.0
    %v227 = vadd.f32 %v225, %v226
    %v228 = vsel %vm177, %v214, 0.0
    %v229 = vadd.f32 %v227, %v228
    %v230 = vsel %vm177, %v216, 0.0
    %v231 = vadd.f32 %v229, %v230
    %v232 = vmul.f32 %v23, %v202
    %v233 = vmul.f32 %v24, %v204
    %v234 = vmul.f32 %v25, %v206
    %v235 = vmul.f32 %v26, %v208
    %v236 = vmul.f32 %v27, %v210
    %v237 = vmul.f32 %v28, %v212
    %v238 = vmul.f32 %v29, %v214
    %v239 = vmul.f32 %v30, %v216
    %vm240 = vcmask 254976
    %v241 = vsel %vm240, %v232, 0.0
    %v242 = vsel %vm240, %v233, 0.0
    %v243 = vadd.f32 %v241, %v242
    %v244 = vsel %vm240, %v234, 0.0
    %v245 = vadd.f32 %v243, %v244
    %v246 = vsel %vm240, %v235, 0.0
    %v247 = vadd.f32 %v245, %v246
    %v248 = vsel %vm240, %v236, 0.0
    %v249 = vadd.f32 %v247, %v248
    %v250 = vsel %vm240, %v237, 0.0
    %v251 = vadd.f32 %v249, %v250
    %v252 = vsel %vm240, %v238, 0.0
    %v253 = vadd.f32 %v251, %v252
    %v254 = vsel %vm240, %v239, 0.0
    %v255 = vadd.f32 %v253, %v254
    %v256 = vrcp.pop %v231
    %v257 = vmul.f32 %v255, %v256
    %258 = vst.msk [vmem:[#allocation3] sm:$0x3] %vm240, %v257
    // Predicated region
    $region22: #{tpu_custom_call.1} parent=1 // pred_check
      _
    $region23: #{tpu_custom_call.1} parent=1 // pred_check_branch
      %260 = sbr.rel (0) target = $region25
    $region24: #{tpu_custom_call.1} parent=1 // pred_region
      %262 = vsyncadd [#allocation4], 0
      %s264 = sshll.u32 [#allocation3], 4
      %s265 = int_to_ptr.vmem [resolvable:$true] %s264
      %s266 = sshll.u32 %s5, 4
      %s267 = int_to_ptr.hbm [resolvable:$true] %s266
      %269 = dma.vmem_to_hbm [thread:$0]  %s265, 32, %s267, [#allocation4]
    $region25: #{tpu_custom_call.1} parent=1 // pred_fallthru
      _
    // Predicated region
    $region26: #{tpu_custom_call.1} parent=1 // pred_check
      _
    $region27: #{tpu_custom_call.1} parent=1 // pred_check_branch
      %271 = sbr.rel (0) target = $region29
    $region28: #{tpu_custom_call.1} parent=1 // pred_region
      %273 = dma.done [#allocation4], 32
    $region29: #{tpu_custom_call.1} parent=1 // pred_fallthru
      _
    %274 = vsyncpa [#allocation4], 1

</llo_original>
